<compile_context>
chip_gen: v6e
topology: v6e:2x2x1
jax: 0.10.0
libtpu: 0.0.40
codegen_flags: <defaults>
</compile_context>

<pallas_src>
import jax
import jax.numpy as jnp
from jax.experimental import pallas as pl
from jax.experimental.pallas import tpu as pltpu


def _round_up(x, m):
    return ((x + m - 1) // m) * m


def _make_kernel(n, hw, tile_hw, sub):
    """Build the ChannelAttention kernel for static shapes.

    n:       batch size
    hw:      total spatial size H*W
    tile_hw: lanes per grid step
    sub:     sublane-aligned row stride in the fused accumulator
             (sum rows at [0:n], max rows at [sub:sub+n])
    """
    inv_hw = 1.0 / float(hw)
    needs_mask = (hw % tile_hw) != 0

    def kernel(x_ref, w1t_ref, w2t_ref, out_ref, acc_ref):
        k = pl.program_id(0)

        # ---- init fused accumulator: sum half -> 0, max half -> -inf -------
        @pl.when(k == 0)
        def _():
            rows = jax.lax.broadcasted_iota(jnp.int32, acc_ref.shape, 0)
            acc_ref[...] = jnp.where(rows < sub, 0.0, -jnp.inf).astype(
                acc_ref.dtype
            )

        # ---- streamed partial reduction over this spatial tile --------------
        x = x_ref[...].astype(jnp.float32)  # (n, C, tile_hw)
        if needs_mask:
            lane = jax.lax.broadcasted_iota(jnp.int32, x.shape, 2)
            valid = (k * tile_hw + lane) < hw
            x_sum = jnp.where(valid, x, 0.0)
            x_max = jnp.where(valid, x, -jnp.inf)
        else:
            x_sum = x
            x_max = x

        part_sum = jnp.sum(x_sum, axis=-1)  # (n, C)
        part_max = jnp.max(x_max, axis=-1)  # (n, C)

        acc_ref[0:n, :] = acc_ref[0:n, :] + part_sum
        acc_ref[sub:sub + n, :] = jnp.maximum(acc_ref[sub:sub + n, :], part_max)

        # ---- finalize: fused (avg | max) MLP + sigmoid, single store --------
        @pl.when(k == pl.num_programs(0) - 1)
        def _():
            acc = acc_ref[...]  # (2*sub, C)
            rows = jax.lax.broadcasted_iota(jnp.int32, acc.shape, 0)
            # sum rows -> mean (divide by true H*W once); max rows untouched.
            scale = jnp.where(
                rows < sub, jnp.float32(inv_hw), jnp.float32(1.0)
            )
            pooled = acc * scale  # (2*sub, C)

            # fc1 -> ReLU -> fc2 on the fused operand (one MXU pass each).
            h = jnp.dot(pooled, w1t_ref[...], preferred_element_type=jnp.float32)
            h = jnp.maximum(h, 0.0)
            y = jnp.dot(h, w2t_ref[...], preferred_element_type=jnp.float32)

            out = jax.nn.sigmoid(y[0:n, :] + y[sub:sub + n, :])  # (n, C)
            out_ref[...] = out.astype(out_ref.dtype)

    return kernel


def channel_attention(x, w1, w2, *, tile_hw=None, vmem_budget_bytes=8 << 20):
    """ChannelAttention forward.

    x:  (N, C, H, W)
    w1: (Cr, C)  fc1 1x1-conv weight (out, in), bias-free
    w2: (C, Cr)  fc2 1x1-conv weight (out, in), bias-free
    Returns (N, C, 1, 1):
        sigmoid(fc2(relu(fc1(avgpool(x)))) + fc2(relu(fc1(maxpool(x)))))
    """
    n, c, h, w = x.shape
    hw = h * w
    x_flat = x.reshape(n, c, hw)

    itemsize = jnp.dtype(x.dtype).itemsize
    if tile_hw is None:
        # Largest lane tile (multiple of 128) whose double-buffered x slab
        # stays within a conservative VMEM budget (safe on v5e/v7x scoped
        # defaults; bump vmem_budget_bytes on v6e if the DMA is exposed).
        max_tile = vmem_budget_bytes // (2 * n * c * itemsize)
        tile_hw = max(128, (max_tile // 128) * 128)
    if hw <= tile_hw:
        tile_hw = hw  # single full-extent tile
    num_tiles = pl.cdiv(hw, tile_hw)

    sub = _round_up(max(n, 1), 8)
    kernel = _make_kernel(n, hw, tile_hw, sub)

    # Pre-transpose weights once OUTSIDE the kernel (no in-kernel XLU .T).
    w1t = jnp.transpose(w1).astype(jnp.float32)  # (C, Cr)
    w2t = jnp.transpose(w2).astype(jnp.float32)  # (Cr, C)

    out = pl.pallas_call(
        kernel,
        out_shape=jax.ShapeDtypeStruct((n, c), x.dtype),
        grid=(num_tiles,),
        in_specs=[
            # Streamed: one (N, C, tile_hw) slab per step (auto double-buffered).
            pl.BlockSpec((n, c, tile_hw), lambda k: (0, 0, k)),
            # Weights: constant index_map -> resident in VMEM for all tiles.
            pl.BlockSpec((c, w1t.shape[1]), lambda k: (0, 0)),
            pl.BlockSpec((w2t.shape[0], c), lambda k: (0, 0)),
        ],
        out_specs=pl.BlockSpec((n, c), lambda k: (0, 0)),
        scratch_shapes=[pltpu.VMEM((2 * sub, c), jnp.float32)],
        compiler_params=pltpu.CompilerParams(
            dimension_semantics=("arbitrary",),
        ),
    )(x_flat, w1t, w2t)

    return out.reshape(n, c, 1, 1)


def _reference(x, w1, w2):
    """Pure-JAX reference of the PyTorch ChannelAttention forward."""
    avg = jnp.mean(x, axis=(2, 3))  # (N, C)
    mx = jnp.max(x, axis=(2, 3))    # (N, C)

    def mlp(v):
        return jnp.maximum(v @ w1.T, 0.0) @ w2.T

    return jax.nn.sigmoid(mlp(avg) + mlp(mx)).reshape(
        x.shape[0], x.shape[1], 1, 1
    )


if __name__ == "__main__":
    key = jax.random.PRNGKey(0)
    k_x, k_x2, k_w1, k_w2 = jax.random.split(key, 4)

    # Small shapes consistent with the module: reduction_ratio=16 needs
    # in_channel >= 16, so use C=32 -> hidden Cr=2.
    N, C = 2, 32
    reduction_ratio = 16
    Cr = C // reduction_ratio

    w1 = jax.random.normal(k_w1, (Cr, C), dtype=jnp.float32) * 0.1  # fc1.weight[:, :, 0, 0]
    w2 = jax.random.normal(k_w2, (C, Cr), dtype=jnp.float32) * 0.1  # fc2.weight[:, :, 0, 0]

    # Case 1: 16x16, auto tile (single full-extent tile).
    x_a = jax.random.normal(k_x, (N, C, 16, 16), dtype=jnp.float32)
    out_a = jax.block_until_ready(channel_attention(x_a, w1, w2))
    ref_a = _reference(x_a, w1, w2)
    assert out_a.shape == (N, C, 1, 1)
    assert jnp.allclose(out_a, ref_a, atol=1e-5, rtol=1e-5)

    # Case 2: 16x16 with forced 128-lane tiles (multi-step accumulation path).
    out_b = jax.block_until_ready(channel_attention(x_a, w1, w2, tile_hw=128))
    assert jnp.allclose(out_b, ref_a, atol=1e-5, rtol=1e-5)

    # Case 3: 18x18 with 128-lane tiles (ragged last tile -> mask path).
    x_c = jax.random.normal(k_x2, (N, C, 18, 18), dtype=jnp.float32)
    out_c = jax.block_until_ready(channel_attention(x_c, w1, w2, tile_hw=128))
    ref_c = _reference(x_c, w1, w2)
    assert jnp.allclose(out_c, ref_c, atol=1e-5, rtol=1e-5)

    print("KERNEL_OK")
</pallas_src>

<mosaic_0001>
module attributes {stable_mosaic.version = 11 : i64} {
  func.func @kernel(%arg0: i32, %arg1: memref<2x32x256xf32, #tpu.memory_space<vmem>>, %arg2: memref<32x2xf32, #tpu.memory_space<vmem>>, %arg3: memref<2x32xf32, #tpu.memory_space<vmem>>, %arg4: memref<2x32xf32, #tpu.memory_space<vmem>>, %arg5: memref<16x32xf32, #tpu.memory_space<vmem>>) attributes {dimension_semantics = [#tpu.dimension_semantics<arbitrary>], iteration_bounds = array<i64: 1>, scalar_prefetch = 0 : i64, scratch_operands = 1 : i64, tpu.core_type = #tpu.core_type<tc>, window_params = [{transform_indices = @transform_0, window_bounds = array<i64: 2, 32, 256>}, {pipeline_mode = #tpu.pipeline_mode<synchronous>, transform_indices = @transform_1, window_bounds = array<i64: 32, 2>}, {pipeline_mode = #tpu.pipeline_mode<synchronous>, transform_indices = @transform_2, window_bounds = array<i64: 2, 32>}, {pipeline_mode = #tpu.pipeline_mode<synchronous>, transform_indices = @transform_3, window_bounds = array<i64: 2, 32>}]} {
    %c0_i32 = arith.constant 0 : i32
    %0 = arith.cmpi eq, %arg0, %c0_i32 : i32
    %1 = arith.extui %0 : i1 to i32
    %c0_i32_0 = arith.constant 0 : i32
    %2 = arith.cmpi ne, %1, %c0_i32_0 : i32
    scf.if %2 {
      %15 = tpu.iota {dimensions = array<i32: 0>} : vector<16x32xi32>
      %c8_i32 = arith.constant 8 : i32
      %16 = vector.broadcast %c8_i32 : i32 to vector<16x32xi32>
      %17 = arith.cmpi slt, %15, %16 : vector<16x32xi32>
      %cst_13 = arith.constant 0.000000e+00 : f32
      %cst_14 = arith.constant 0xFF800000 : f32
      %18 = vector.broadcast %cst_13 : f32 to vector<16x32xf32>
      %19 = vector.broadcast %cst_14 : f32 to vector<16x32xf32>
      %20 = arith.select %17, %18, %19 : vector<16x32xi1>, vector<16x32xf32>
      %c0_15 = arith.constant 0 : index
      %c0_16 = arith.constant 0 : index
      %21 = vector.load %arg5[%c0_15, %c0_16] : memref<16x32xf32, #tpu.memory_space<vmem>>, vector<16x32xf32>
      tpu.vector_store %arg5[%c0_15, %c0_16], %20 {strides = array<i32>} : memref<16x32xf32, #tpu.memory_space<vmem>>, vector<16x32xf32>,
    } else {
    }
    %c0 = arith.constant 0 : index
    %c0_1 = arith.constant 0 : index
    %c0_2 = arith.constant 0 : index
    %3 = vector.load %arg1[%c0, %c0_1, %c0_2] : memref<2x32x256xf32, #tpu.memory_space<vmem>>, vector<2x32x256xf32>
    %cst = arith.constant dense<0.000000e+00> : vector<2x32xf32>
    %4 = vector.multi_reduction <add>, %3, %cst [2] : vector<2x32x256xf32> to vector<2x32xf32>
    %cst_3 = arith.constant dense<0xFF800000> : vector<2x32xf32>
    %5 = vector.multi_reduction <maximumf>, %3, %cst_3 [2] : vector<2x32x256xf32> to vector<2x32xf32>
    %c0_4 = arith.constant 0 : index
    %c0_5 = arith.constant 0 : index
    %6 = vector.load %arg5[%c0_4, %c0_5] : memref<16x32xf32, #tpu.memory_space<vmem>>, vector<2x32xf32>
    %7 = arith.addf %6, %4 : vector<2x32xf32>
    %c0_6 = arith.constant 0 : index
    %c0_7 = arith.constant 0 : index
    %8 = vector.load %arg5[%c0_6, %c0_7] : memref<16x32xf32, #tpu.memory_space<vmem>>, vector<2x32xf32>
    tpu.vector_store %arg5[%c0_6, %c0_7], %7 {strides = array<i32>} : memref<16x32xf32, #tpu.memory_space<vmem>>, vector<2x32xf32>,
    %c8 = arith.constant 8 : index
    %c0_8 = arith.constant 0 : index
    %9 = vector.load %arg5[%c8, %c0_8] : memref<16x32xf32, #tpu.memory_space<vmem>>, vector<2x32xf32>
    %10 = arith.maximumf %9, %5 : vector<2x32xf32>
    %c8_9 = arith.constant 8 : index
    %c0_10 = arith.constant 0 : index
    %11 = vector.load %arg5[%c8_9, %c0_10] : memref<16x32xf32, #tpu.memory_space<vmem>>, vector<2x32xf32>
    tpu.vector_store %arg5[%c8_9, %c0_10], %10 {strides = array<i32>} : memref<16x32xf32, #tpu.memory_space<vmem>>, vector<2x32xf32>,
    %c0_i32_11 = arith.constant 0 : i32
    %12 = arith.cmpi eq, %arg0, %c0_i32_11 : i32
    %13 = arith.extui %12 : i1 to i32
    %c0_i32_12 = arith.constant 0 : i32
    %14 = arith.cmpi ne, %13, %c0_i32_12 : i32
    scf.if %14 {
      %c0_13 = arith.constant 0 : index
      %c0_14 = arith.constant 0 : index
      %15 = vector.load %arg5[%c0_13, %c0_14] : memref<16x32xf32, #tpu.memory_space<vmem>>, vector<16x32xf32>
      %16 = tpu.iota {dimensions = array<i32: 0>} : vector<16x32xi32>
      %c8_i32 = arith.constant 8 : i32
      %17 = vector.broadcast %c8_i32 : i32 to vector<16x32xi32>
      %18 = arith.cmpi slt, %16, %17 : vector<16x32xi32>
      %cst_15 = arith.constant 3.906250e-03 : f32
      %cst_16 = arith.constant 1.000000e+00 : f32
      %19 = vector.broadcast %cst_15 : f32 to vector<16x32xf32>
      %20 = vector.broadcast %cst_16 : f32 to vector<16x32xf32>
      %21 = arith.select %18, %19, %20 : vector<16x32xi1>, vector<16x32xf32>
      %22 = arith.mulf %15, %21 : vector<16x32xf32>
      %c0_17 = arith.constant 0 : index
      %c0_18 = arith.constant 0 : index
      %23 = vector.load %arg2[%c0_17, %c0_18] : memref<32x2xf32, #tpu.memory_space<vmem>>, vector<32x2xf32>
      %cst_19 = arith.constant dense<0.000000e+00> : vector<16x2xf32>
      %24 = tpu.matmul %22, %23, %cst_19 {dimension_numbers = #tpu.dot_dimension_numbers<[1], [0], [0], [1], [0, 0, 1, 1], [], []>} : vector<16x32xf32>, vector<32x2xf32>, vector<16x2xf32> -> vector<16x2xf32>
      %cst_20 = arith.constant 0.000000e+00 : f32
      %25 = vector.broadcast %cst_20 : f32 to vector<16x2xf32>
      %26 = arith.maximumf %24, %25 : vector<16x2xf32>
      %c0_21 = arith.constant 0 : index
      %c0_22 = arith.constant 0 : index
      %27 = vector.load %arg3[%c0_21, %c0_22] : memref<2x32xf32, #tpu.memory_space<vmem>>, vector<2x32xf32>
      %cst_23 = arith.constant dense<0.000000e+00> : vector<16x32xf32>
      %28 = tpu.matmul %26, %27, %cst_23 {dimension_numbers = #tpu.dot_dimension_numbers<[1], [0], [0], [1], [0, 0, 1, 1], [], []>} : vector<16x2xf32>, vector<2x32xf32>, vector<16x32xf32> -> vector<16x32xf32>
      %29 = vector.extract_strided_slice %28 {offsets = [0, 0], sizes = [2, 32], strides = [1, 1]} : vector<16x32xf32> to vector<2x32xf32>
      %30 = vector.extract_strided_slice %28 {offsets = [8, 0], sizes = [2, 32], strides = [1, 1]} : vector<16x32xf32> to vector<2x32xf32>
      %31 = arith.addf %29, %30 : vector<2x32xf32>
      %32 = arith.negf %31 : vector<2x32xf32>
      %33 = math.exp %32 : vector<2x32xf32>
      %cst_24 = arith.constant 1.000000e+00 : f32
      %34 = vector.broadcast %cst_24 : f32 to vector<2x32xf32>
      %35 = arith.addf %34, %33 : vector<2x32xf32>
      %36 = arith.divf %34, %35 : vector<2x32xf32>
      %c0_25 = arith.constant 0 : index
      %c0_26 = arith.constant 0 : index
      %37 = vector.load %arg4[%c0_25, %c0_26] : memref<2x32xf32, #tpu.memory_space<vmem>>, vector<2x32xf32>
      tpu.vector_store %arg4[%c0_25, %c0_26], %36 {strides = array<i32>} : memref<2x32xf32, #tpu.memory_space<vmem>>, vector<2x32xf32>,
    } else {
    }
    return
  }
  func.func @transform_0(%arg0: i32) -> (i32, i32, i32) {
    %c0_i32 = arith.constant 0 : i32
    %c0_i32_0 = arith.constant 0 : i32
    %c0_i32_1 = arith.constant 0 : i32
    return %c0_i32, %c0_i32_0, %arg0 : i32, i32, i32
  }
  func.func @transform_1(%arg0: i32) -> (i32, i32) {
    %c0_i32 = arith.constant 0 : i32
    %c0_i32_0 = arith.constant 0 : i32
    %c0_i32_1 = arith.constant 0 : i32
    return %c0_i32, %c0_i32_0 : i32, i32
  }
  func.func @transform_2(%arg0: i32) -> (i32, i32) {
    %c0_i32 = arith.constant 0 : i32
    %c0_i32_0 = arith.constant 0 : i32
    %c0_i32_1 = arith.constant 0 : i32
    return %c0_i32, %c0_i32_0 : i32, i32
  }
  func.func @transform_3(%arg0: i32) -> (i32, i32) {
    %c0_i32 = arith.constant 0 : i32
    %c0_i32_0 = arith.constant 0 : i32
    %c0_i32_1 = arith.constant 0 : i32
    return %c0_i32, %c0_i32_0 : i32, i32
  }
}

</mosaic_0001>

<llo_original>
// kernel: tpu_custom_call.1
$region0: #{tpu_custom_call.1}
  #allocation0 [shape = 'u32[]', space=smem, size = 0x4, offset = 0x4, fixed_abs, tag = 'smem constant byte address 0x4 - core index']
  #allocation1 [shape = 'u32[144,128]{1,0:T(1,128)}', space=vmem, size = 0x12000, scoped, tag = 'internal scratch']
  #allocation2 [shape = 'f32[16,32]{1,0:T(8,128)}', space=vmem, size = 0x2000, scoped, tag = 'scratch operand']
  %s0 = inlined_call_operand.hbm [shape: f32[2,32,256], index: 0, kind: input, shape index: {}]
  %s1 = inlined_call_operand.vmem [shape: f32[32,2], index: 1, kind: input, shape index: {}]
  %s2 = inlined_call_operand.vmem [shape: f32[2,32], index: 2, kind: input, shape index: {}]
  %s3 = inlined_call_operand.hbm [shape: f32[2,32], index: 3, kind: output, shape index: {}]
  %s4 = sld [smem:[#allocation0]]
  $region34: #{tpu_custom_call.1} parent=0
    _
  %s6 = ssub.s32 1, %s4
  %s7 = scalar_select 0, %s6, %s4
  $region1: #{tpu_custom_call.1} parent=0
    #allocation3 [shape = 'u8[65536]{0}', space=vmem, size = 0x10000, scoped, tag = 'input window, operand 0, single buffered']
    #allocation4 [shape = 's32[1]{0}', space=sflag, size = 0x4, scoped, tag = 'scoped memory for tpu_custom_call.1']
    #allocation5 [shape = 's32[1]{0}', space=sflag, size = 0x4, scoped, tag = 'scoped memory for tpu_custom_call.1']
    #allocation6 [shape = 'u8[1024]{0}', space=vmem, size = 0x400, scoped, tag = 'output window, operand 0, single buffered']
    %8 = vsyncpa [#allocation4], 0
    %9 = vsyncpa [#allocation5], 0
    // Predicated region
    $region2: #{tpu_custom_call.1} parent=1 // pred_check
      _
    $region3: #{tpu_custom_call.1} parent=1 // pred_check_branch
      %11 = sbr.rel (0) target = $region5
    $region4: #{tpu_custom_call.1} parent=1 // pred_region
      %s13 = ssub.s32 2048, 2048
      %14 = vsyncadd [#allocation4], %s13
      %s15 = sshll.u32 [#allocation3], 4
      %s16 = int_to_ptr.vmem [resolvable:$true] %s15
      %21 = dma.hbm_to_vmem [thread:$0]  %s0, 2048, %s16, [#allocation4], 256, 256, 16
    $region5: #{tpu_custom_call.1} parent=1 // pred_fallthru
      _
    // Predicated region
    $region6: #{tpu_custom_call.1} parent=1 // pred_check
      _
    $region7: #{tpu_custom_call.1} parent=1 // pred_check_branch
      %23 = sbr.rel (0) target = $region9
    $region8: #{tpu_custom_call.1} parent=1 // pred_region
      _
    $region9: #{tpu_custom_call.1} parent=1 // pred_fallthru
      _
    // Predicated region
    $region10: #{tpu_custom_call.1} parent=1 // pred_check
      _
    $region11: #{tpu_custom_call.1} parent=1 // pred_check_branch
      %25 = sbr.rel (0) target = $region13
    $region12: #{tpu_custom_call.1} parent=1 // pred_region
      _
    $region13: #{tpu_custom_call.1} parent=1 // pred_fallthru
      _
    // Predicated region
    $region14: #{tpu_custom_call.1} parent=1 // pred_check
      _
    $region15: #{tpu_custom_call.1} parent=1 // pred_check_branch
      %27 = sbr.rel (0) target = $region17
    $region16: #{tpu_custom_call.1} parent=1 // pred_region
      %28 = dma.done [#allocation4], 2048
    $region17: #{tpu_custom_call.1} parent=1 // pred_fallthru
      _
    %p29 = scmp.eq.s32.totalorder 0, 0
    // Predicated region
    $region18: #{tpu_custom_call.1} parent=1 // pred_check
      %p30 = pneg %p29
    $region19: #{tpu_custom_call.1} parent=1 // pred_check_branch
      %32 = sbr.rel (%p30) target = $region21
    $region20: #{tpu_custom_call.1} parent=1 // pred_region
      %v33 = vlaneseq
      %v34 = vshrl.u32 %v33, 7
      %v35 = vadd.s32 %v34, 8
      %vm36 = vcmp.lt.s32.totalorder %v34, 8
      %vm37 = vcmp.lt.s32.totalorder %v35, 8
      %v38 = vsel %vm36, 0.0, -inf
      %v39 = vsel %vm37, 0.0, -inf
      %vm40 = vcmask 261120
      %41 = vst.msk [vmem:[#allocation2] sm:$0xff] %vm40, %v38
      %42 = vst.msk [vmem:[#allocation2 + $0x8] sm:$0xff] %vm40, %v39
    $region21: #{tpu_custom_call.1} parent=1 // pred_fallthru
      _
    %v43 = vld [vmem:[#allocation3] sm:$0xff]
    %v44 = vld [vmem:[#allocation3 + $0x8] sm:$0xff]
    %v45 = vld [vmem:[#allocation3 + $0x10] sm:$0xff]
    %v46 = vld [vmem:[#allocation3 + $0x18] sm:$0xff]
    %v47 = vld [vmem:[#allocation3 + $0x20] sm:$0xff]
    %v48 = vld [vmem:[#allocation3 + $0x28] sm:$0xff]
    %v49 = vld [vmem:[#allocation3 + $0x30] sm:$0xff]
    %v50 = vld [vmem:[#allocation3 + $0x38] sm:$0xff]
    %v51 = vld [vmem:[#allocation3 + $0x40] sm:$0xff]
    %v52 = vld [vmem:[#allocation3 + $0x48] sm:$0xff]
    %v53 = vld [vmem:[#allocation3 + $0x50] sm:$0xff]
    %v54 = vld [vmem:[#allocation3 + $0x58] sm:$0xff]
    %v55 = vld [vmem:[#allocation3 + $0x60] sm:$0xff]
    %v56 = vld [vmem:[#allocation3 + $0x68] sm:$0xff]
    %v57 = vld [vmem:[#allocation3 + $0x70] sm:$0xff]
    %v58 = vld [vmem:[#allocation3 + $0x78] sm:$0xff]
    %v59 = vadd.f32 %v43, %v44
    %60 = vadd.xlane.f32.xlu0 %v59
    %v61 = vpop.xlane.xlu0 %60
    %v62 = vadd.f32 %v45, %v46
    %63 = vadd.xlane.f32.xlu0 %v62
    %v64 = vpop.xlane.xlu0 %63
    %v65 = vadd.f32 %v47, %v48
    %66 = vadd.xlane.f32.xlu0 %v65
    %v67 = vpop.xlane.xlu0 %66
    %v68 = vadd.f32 %v49, %v50
    %69 = vadd.xlane.f32.xlu0 %v68
    %v70 = vpop.xlane.xlu0 %69
    %v71 = vadd.f32 %v51, %v52
    %72 = vadd.xlane.f32.xlu0 %v71
    %v73 = vpop.xlane.xlu0 %72
    %v74 = vadd.f32 %v53, %v54
    %75 = vadd.xlane.f32.xlu0 %v74
    %v76 = vpop.xlane.xlu0 %75
    %v77 = vadd.f32 %v55, %v56
    %78 = vadd.xlane.f32.xlu0 %v77
    %v79 = vpop.xlane.xlu0 %78
    %v80 = vadd.f32 %v57, %v58
    %81 = vadd.xlane.f32.xlu0 %v80
    %v82 = vpop.xlane.xlu0 %81
    %v83 = vmax.f32 %v43, %v44
    %84 = vmax.xlane.f32.xlu0 %v83
    %v85 = vpop.xlane.xlu0 %84
    %v86 = vmax.f32 %v45, %v46
    %87 = vmax.xlane.f32.xlu0 %v86
    %v88 = vpop.xlane.xlu0 %87
    %v89 = vmax.f32 %v47, %v48
    %90 = vmax.xlane.f32.xlu0 %v89
    %v91 = vpop.xlane.xlu0 %90
    %v92 = vmax.f32 %v49, %v50
    %93 = vmax.xlane.f32.xlu0 %v92
    %v94 = vpop.xlane.xlu0 %93
    %v95 = vmax.f32 %v51, %v52
    %96 = vmax.xlane.f32.xlu0 %v95
    %v97 = vpop.xlane.xlu0 %96
    %v98 = vmax.f32 %v53, %v54
    %99 = vmax.xlane.f32.xlu0 %v98
    %v100 = vpop.xlane.xlu0 %99
    %v101 = vmax.f32 %v55, %v56
    %102 = vmax.xlane.f32.xlu0 %v101
    %v103 = vpop.xlane.xlu0 %102
    %v104 = vmax.f32 %v57, %v58
    %105 = vmax.xlane.f32.xlu0 %v104
    %v106 = vpop.xlane.xlu0 %105
    %v107 = vld [vmem:[#allocation2] sm:$0x3]
    %v116 = vlaneseq
    %v117 = vand.u32 %v116, 127
    %v118 = vlaneseq
    %v119 = vshrl.u32 %v118, 7
    %v120 = vsub.s32 %v117, %v119
    %v121 = vrot.slane %v61, %v120
    %v122 = vadd.s32 %v117, 4294967288
    %v123 = vlaneseq
    %v124 = vshrl.u32 %v123, 7
    %v125 = vsub.s32 %v122, %v124
    %v126 = vrot.slane %v64, %v125
    %vm127 = vcmask 130112
    %v128 = vsel %vm127, %v126, %v121
    %v129 = vadd.s32 %v117, 4294967280
    %v130 = vlaneseq
    %v131 = vshrl.u32 %v130, 7
    %v132 = vsub.s32 %v129, %v131
    %v133 = vrot.slane %v67, %v132
    %vm134 = vcmask 195712
    %v135 = vsel %vm134, %v133, %v128
    %v136 = vadd.s32 %v117, 4294967272
    %v137 = vlaneseq
    %v138 = vshrl.u32 %v137, 7
    %v139 = vsub.s32 %v136, %v138
    %v140 = vrot.slane %v70, %v139
    %vm141 = vcmask 261312
    %v142 = vsel %vm141, %v140, %v135
    %v143 = vlaneseq
    %v144 = vshrl.u32 %v143, 7
    %v145 = vsub.s32 %v117, %v144
    %v146 = vrot.slane %v73, %v145
    %v147 = vlaneseq
    %v148 = vshrl.u32 %v147, 7
    %v149 = vsub.s32 %v122, %v148
    %v150 = vrot.slane %v76, %v149
    %v151 = vsel %vm127, %v150, %v146
    %v152 = vlaneseq
    %v153 = vshrl.u32 %v152, 7
    %v154 = vsub.s32 %v129, %v153
    %v155 = vrot.slane %v79, %v154
    %v156 = vsel %vm134, %v155, %v151
    %v157 = vlaneseq
    %v158 = vshrl.u32 %v157, 7
    %v159 = vsub.s32 %v136, %v158
    %v160 = vrot.slane %v82, %v159
    %v161 = vsel %vm141, %v160, %v156
    %vm162 = vcmask 1041409
    %v163 = vsel %vm162, %v161, %v142
    %v165 = vadd.f32 %v107, %v163
    %vm166 = vcmask 254976
    %167 = vst.msk [vmem:[#allocation2] sm:$0x3] %vm166, %v165
    %v168 = vld [vmem:[#allocation2 + $0x8] sm:$0x3]
    %v177 = vlaneseq
    %v178 = vshrl.u32 %v177, 7
    %v179 = vsub.s32 %v117, %v178
    %v180 = vrot.slane %v85, %v179
    %v181 = vlaneseq
    %v182 = vshrl.u32 %v181, 7
    %v183 = vsub.s32 %v122, %v182
    %v184 = vrot.slane %v88, %v183
    %v185 = vsel %vm127, %v184, %v180
    %v186 = vlaneseq
    %v187 = vshrl.u32 %v186, 7
    %v188 = vsub.s32 %v129, %v187
    %v189 = vrot.slane %v91, %v188
    %v190 = vsel %vm134, %v189, %v185
    %v191 = vlaneseq
    %v192 = vshrl.u32 %v191, 7
    %v193 = vsub.s32 %v136, %v192
    %v194 = vrot.slane %v94, %v193
    %v195 = vsel %vm141, %v194, %v190
    %v196 = vlaneseq
    %v197 = vshrl.u32 %v196, 7
    %v198 = vsub.s32 %v117, %v197
    %v199 = vrot.slane %v97, %v198
    %v200 = vlaneseq
    %v201 = vshrl.u32 %v200, 7
    %v202 = vsub.s32 %v122, %v201
    %v203 = vrot.slane %v100, %v202
    %v204 = vsel %vm127, %v203, %v199
    %v205 = vlaneseq
    %v206 = vshrl.u32 %v205, 7
    %v207 = vsub.s32 %v129, %v206
    %v208 = vrot.slane %v103, %v207
    %v209 = vsel %vm134, %v208, %v204
    %v210 = vlaneseq
    %v211 = vshrl.u32 %v210, 7
    %v212 = vsub.s32 %v136, %v211
    %v213 = vrot.slane %v106, %v212
    %v214 = vsel %vm141, %v213, %v209
    %v215 = vsel %vm162, %v214, %v195
    %v217 = vmax.f32 %v168, %v215
    %218 = vst.msk [vmem:[#allocation2 + $0x8] sm:$0x3] %vm166, %v217
    // Predicated region
    $region22: #{tpu_custom_call.1} parent=1 // pred_check
      %p219 = pneg %p29
    $region23: #{tpu_custom_call.1} parent=1 // pred_check_branch
      %221 = sbr.rel (%p219) target = $region25
    $region24: #{tpu_custom_call.1} parent=1 // pred_region
      %v222 = vld [vmem:[#allocation2] sm:$0xff]
      %v223 = vld [vmem:[#allocation2 + $0x8] sm:$0xff]
      %v224 = vlaneseq
      %v225 = vshrl.u32 %v224, 7
      %v226 = vadd.s32 %v225, 8
      %vm227 = vcmp.lt.s32.totalorder %v225, 8
      %vm228 = vcmp.lt.s32.totalorder %v226, 8
      %v229 = vsel %vm227, 0.00390625, 1.0
      %v230 = vsel %vm228, 0.00390625, 1.0
      %v231 = vmul.f32 %v222, %v229
      %v232 = vmul.f32 %v223, %v230
      %v233 = vld [vmem:[%s1] sm:$0xff]
      %v234 = vld [vmem:[%s1 + $0x8] sm:$0xff]
      %v235 = vld [vmem:[%s1 + $0x10] sm:$0xff]
      %v236 = vld [vmem:[%s1 + $0x18] sm:$0xff]
      %vm237 = vcmask 261120
      %v239 = vsel %vm237, %v231, 0
      %v242 = vsel %vm237, %v232, 0
      %244 = vmatprep.subr.mxu0 0.0
      %245 = vmatpush1.msra.mxu0 0.0
      %246 = vmatprep.subr.mxu0 0.0
      %247 = vmatpush1.msra.mxu0 0.0
      %248 = vmatprep.subr.mxu0 0.0
      %249 = vmatpush1.msra.mxu0 0.0
      %250 = vmatprep.subr.mxu0 0.0
      %251 = vmatpush1.msra.mxu0 0.0
      %252 = vmatprep.subr.mxu0 0.0
      %253 = vmatpush1.msra.mxu0 0.0
      %254 = vmatprep.subr.mxu0 0.0
      %255 = vmatpush1.msra.mxu0 0.0
      %256 = vmatprep.subr.mxu0 0.0
      %257 = vmatpush1.msra.mxu0 0.0
      %258 = vmatprep.subr.mxu0 0.0
      %259 = vmatpush1.msra.mxu0 0.0
      %260 = vmatprep.subr.mxu0 0.0
      %261 = vmatpush1.msra.mxu0 0.0
      %262 = vmatprep.subr.mxu0 0.0
      %263 = vmatpush1.msra.mxu0 0.0
      %264 = vmatprep.subr.mxu0 0.0
      %265 = vmatpush1.msra.mxu0 0.0
      %266 = vmatprep.subr.mxu0 0.0
      %267 = vmatpush1.msra.mxu0 0.0
      %268 = vmatprep.subr.mxu0 0.0
      %269 = vmatpush1.msra.mxu0 %v236
      %270 = vmatprep.subr.mxu0 0.0
      %271 = vmatpush1.msra.mxu0 %v235
      %272 = vmatprep.subr.mxu0 0.0
      %273 = vmatpush1.msra.mxu0 %v234
      %274 = vmatprep.subr.mxu0 0.0
      %275 = vmatpush1.msra.mxu0 %v233
      %276 = vmatprep.subr.mxu0 0.0
      %277 = vmatpush2.msra.mxu0 0.0
      %278 = vmatprep.subr.mxu0 0.0
      %279 = vmatpush2.msra.mxu0 0.0
      %280 = vmatprep.subr.mxu0 0.0
      %281 = vmatpush2.msra.mxu0 0.0
      %282 = vmatprep.subr.mxu0 0.0
      %283 = vmatpush2.msra.mxu0 0.0
      %284 = vmatprep.subr.mxu0 0.0
      %285 = vmatpush2.msra.mxu0 0.0
      %286 = vmatprep.subr.mxu0 0.0
      %287 = vmatpush2.msra.mxu0 0.0
      %288 = vmatprep.subr.mxu0 0.0
      %289 = vmatpush2.msra.mxu0 0.0
      %290 = vmatprep.subr.mxu0 0.0
      %291 = vmatpush2.msra.mxu0 0.0
      %292 = vmatprep.subr.mxu0 0.0
      %293 = vmatpush2.msra.mxu0 0.0
      %294 = vmatprep.subr.mxu0 0.0
      %295 = vmatpush2.msra.mxu0 0.0
      %296 = vmatprep.subr.mxu0 0.0
      %297 = vmatpush2.msra.mxu0 0.0
      %298 = vmatprep.subr.mxu0 0.0
      %299 = vmatpush2.msra.mxu0 0.0
      %300 = vmatprep.subr.mxu0 0.0
      %301 = vmatpush2.msra.mxu0 0.0
      %302 = vmatprep.subr.mxu0 0.0
      %303 = vmatpush2.msra.mxu0 0.0
      %304 = vmatprep.subr.mxu0 0.0
      %305 = vmatpush2.msra.mxu0 0.0
      %306 = vmatprep.subr.mxu0 0.0
      %307 = vmatpush2.msra.mxu0 0.0
      %308 = vmatprep.mubr.f32.mxu0 0.0
      %309 = vmatmul.mubr.f32.gmra.mxu0 %v239
      %v310 = vpop.f32.mrf.mxu0
      %v311 = vadd.f32 0.0, %v310
      %v312 = vpop.f32.mrf.mxu0
      %313 = vmatprep.mubr.f32.mxu0 0.0
      %314 = vmatmul.mubr.f32.gmra.mxu0 %v242
      %v315 = vpop.f32.mrf.mxu0
      %v316 = vadd.f32 0.0, %v315
      %v317 = vpop.f32.mrf.mxu0
      %318 = vdwg.mxu0
      %v319 = vmax.f32 %v311, 0.0
      %v320 = vmax.f32 %v316, 0.0
      %v321 = vld [vmem:[%s2] sm:$0x3]
      %vm322 = vcmask 15360
      %v324 = vsel %vm322, %v319, 0
      %v327 = vsel %vm322, %v320, 0
      %vm329 = vcmask 1041408
      %v331 = vsel %vm329, %v321, 0
      %333 = vmatprep.subr.mxu0 0.0
      %334 = vmatpush1.msra.mxu0 0.0
      %335 = vmatprep.subr.mxu0 0.0
      %336 = vmatpush1.msra.mxu0 0.0
      %337 = vmatprep.subr.mxu0 0.0
      %338 = vmatpush1.msra.mxu0 0.0
      %339 = vmatprep.subr.mxu0 0.0
      %340 = vmatpush1.msra.mxu0 0.0
      %341 = vmatprep.subr.mxu0 0.0
      %342 = vmatpush1.msra.mxu0 0.0
      %343 = vmatprep.subr.mxu0 0.0
      %344 = vmatpush1.msra.mxu0 0.0
      %345 = vmatprep.subr.mxu0 0.0
      %346 = vmatpush1.msra.mxu0 0.0
      %347 = vmatprep.subr.mxu0 0.0
      %348 = vmatpush1.msra.mxu0 0.0
      %349 = vmatprep.subr.mxu0 0.0
      %350 = vmatpush1.msra.mxu0 0.0
      %351 = vmatprep.subr.mxu0 0.0
      %352 = vmatpush1.msra.mxu0 0.0
      %353 = vmatprep.subr.mxu0 0.0
      %354 = vmatpush1.msra.mxu0 0.0
      %355 = vmatprep.subr.mxu0 0.0
      %356 = vmatpush1.msra.mxu0 0.0
      %357 = vmatprep.subr.mxu0 0.0
      %358 = vmatpush1.msra.mxu0 0.0
      %359 = vmatprep.subr.mxu0 0.0
      %360 = vmatpush1.msra.mxu0 0.0
      %361 = vmatprep.subr.mxu0 0.0
      %362 = vmatpush1.msra.mxu0 0.0
      %363 = vmatprep.subr.mxu0 0.0
      %364 = vmatpush1.msra.mxu0 %v331
      %365 = vmatprep.subr.mxu0 0.0
      %366 = vmatpush2.msra.mxu0 0.0
      %367 = vmatprep.subr.mxu0 0.0
      %368 = vmatpush2.msra.mxu0 0.0
      %369 = vmatprep.subr.mxu0 0.0
      %370 = vmatpush2.msra.mxu0 0.0
      %371 = vmatprep.subr.mxu0 0.0
      %372 = vmatpush2.msra.mxu0 0.0
      %373 = vmatprep.subr.mxu0 0.0
      %374 = vmatpush2.msra.mxu0 0.0
      %375 = vmatprep.subr.mxu0 0.0
      %376 = vmatpush2.msra.mxu0 0.0
      %377 = vmatprep.subr.mxu0 0.0
      %378 = vmatpush2.msra.mxu0 0.0
      %379 = vmatprep.subr.mxu0 0.0
      %380 = vmatpush2.msra.mxu0 0.0
      %381 = vmatprep.subr.mxu0 0.0
      %382 = vmatpush2.msra.mxu0 0.0
      %383 = vmatprep.subr.mxu0 0.0
      %384 = vmatpush2.msra.mxu0 0.0
      %385 = vmatprep.subr.mxu0 0.0
      %386 = vmatpush2.msra.mxu0 0.0
      %387 = vmatprep.subr.mxu0 0.0
      %388 = vmatpush2.msra.mxu0 0.0
      %389 = vmatprep.subr.mxu0 0.0
      %390 = vmatpush2.msra.mxu0 0.0
      %391 = vmatprep.subr.mxu0 0.0
      %392 = vmatpush2.msra.mxu0 0.0
      %393 = vmatprep.subr.mxu0 0.0
      %394 = vmatpush2.msra.mxu0 0.0
      %395 = vmatprep.subr.mxu0 0.0
      %396 = vmatpush2.msra.mxu0 0.0
      %397 = vmatprep.mubr.f32.mxu0 0.0
      %398 = vmatmul.mubr.f32.gmra.mxu0 %v324
      %v399 = vpop.f32.mrf.mxu0
      %v400 = vadd.f32 0.0, %v399
      %v401 = vpop.f32.mrf.mxu0
      %402 = vmatprep.mubr.f32.mxu0 0.0
      %403 = vmatmul.mubr.f32.gmra.mxu0 %v327
      %v404 = vpop.f32.mrf.mxu0
      %v405 = vadd.f32 0.0, %v404
      %v406 = vpop.f32.mrf.mxu0
      %407 = vdwg.mxu0
      %v408 = vadd.f32 %v400, %v405
      %v409 = vxor.u32 %v408, 2147483648
      %v410 = vmul.f32 %v409, 1.442695
      %v411 = vpow.pop %v410
      %v412 = vadd.f32 %v411, 1.0
      %v413 = vrcp.pop %v412
      %v414 = vmul.f32 1.0, %v413
      %415 = vst.msk [vmem:[#allocation6] sm:$0x3] %vm166, %v414
    $region25: #{tpu_custom_call.1} parent=1 // pred_fallthru
      _
    // Predicated region
    $region26: #{tpu_custom_call.1} parent=1 // pred_check
      _
    $region27: #{tpu_custom_call.1} parent=1 // pred_check_branch
      %417 = sbr.rel (0) target = $region29
    $region28: #{tpu_custom_call.1} parent=1 // pred_region
      %s419 = ssub.s32 32, 32
      %420 = vsyncadd [#allocation5], %s419
      %s422 = sshll.u32 [#allocation6], 4
      %s423 = int_to_ptr.vmem [resolvable:$true] %s422
      %425 = dma.vmem_to_hbm [thread:$0]  %s423, 32, %s3, [#allocation5]
    $region29: #{tpu_custom_call.1} parent=1 // pred_fallthru
      _
    // Predicated region
    $region30: #{tpu_custom_call.1} parent=1 // pred_check
      _
    $region31: #{tpu_custom_call.1} parent=1 // pred_check_branch
      %427 = sbr.rel (0) target = $region33
    $region32: #{tpu_custom_call.1} parent=1 // pred_region
      %428 = dma.done [#allocation5], 32
    $region33: #{tpu_custom_call.1} parent=1 // pred_fallthru
      _
    %429 = vsyncpa [#allocation4], 1
    %430 = vsyncpa [#allocation5], 1

</llo_original>
